<compile_context>
chip_gen: v6e
topology: v6e:2x2x1
jax: 0.10.0
libtpu: 0.0.40
codegen_flags: <defaults>
</compile_context>

<pallas_src>
import jax
import jax.numpy as jnp
import numpy as np
from jax.experimental import pallas as pl
from jax.experimental.pallas import tpu as pltpu


def _round_up(x, m):
    return ((x + m - 1) // m) * m


# ---------- fused kernel: mean-aggregate + concat-update + bias + leaky_relu ----------

def fused_sage_kernel(a_ref, x_ref, xs_ref, ws_ref, wa_ref, b_ref, o_ref, aggr_acc):
    k = pl.program_id(1)

    @pl.when(k == 0)
    def _init():
        aggr_acc[...] = jnp.zeros_like(aggr_acc)

    # bf16 MXU matmul, f32 accumulation over the n_src reduction axis.
    aggr_acc[...] += jnp.dot(a_ref[...], x_ref[...],
                             preferred_element_type=jnp.float32)

    @pl.when(k == pl.num_programs(1) - 1)
    def _epilogue():
        # concat([x_self, aggr], -1) @ W + b
        #   == x_self @ kron(I_T, W[:C]) + aggr @ kron(I_T, W[C:]) + b
        y = (jnp.dot(xs_ref[...], ws_ref[...], preferred_element_type=jnp.float32)
             + jnp.dot(aggr_acc[...].astype(jnp.bfloat16), wa_ref[...],
                       preferred_element_type=jnp.float32)
             + b_ref[...])
        # fused F.leaky_relu (negative_slope=0.01); lane-dense (128-wide) store.
        o_ref[...] = jnp.where(y >= 0, y, 0.01 * y).astype(o_ref.dtype)


# ---------------- layer wrapper ----------------

def sage_conv_layer(x_src, edge_index, edge_weight, size, res_n_id, W, b,
                    *, block_dst=1024, block_src=4096, out_dtype=jnp.float32):
    """One MySAGEConv(concat=True, normalize=False) + leaky_relu.

    x_src: [N_src, T, C]; edge_index: [2, E] int32 (row0=src, row1=dst);
    edge_weight: [E] f32; size: (N_src, N_dst); res_n_id: [N_dst] int32;
    W: [2*C, O]; b: [O].  Returns [N_dst, T, O] in `out_dtype`.
    """
    n_src, n_dst = size
    _, T, C = x_src.shape
    O = W.shape[1]
    TC, TO = T * C, T * O
    TC_pad = _round_up(TC, 128)
    TO_pad = _round_up(TO, 128)
    src, dst = edge_index[0], edge_index[1]

    # ---- wrapper glue (hoistable out of the hot path for a static subgraph) ----
    # scatter_mean(w * x_j) == (A @ X) with per-destination degree-normalized weights.
    deg = jax.ops.segment_sum(jnp.ones_like(edge_weight), dst, num_segments=n_dst)
    w_norm = edge_weight / jnp.maximum(deg, 1.0)[dst]

    # dst tiling: multiples of 16 (bf16 sublane packing); try >= 2 tiles so the
    # "parallel" dst axis can shard across both TensorCores (v7x megacore).
    n_dst_pad = _round_up(n_dst, 16)
    if n_dst_pad <= block_dst:
        if n_dst_pad >= 32:
            bd = _round_up(n_dst_pad, 32) // 2
            n_dst_pad = 2 * bd
        else:
            bd = n_dst_pad
    else:
        bd = block_dst
        n_dst_pad = _round_up(n_dst_pad, bd)

    # src tiling: the A block's last dim must be a multiple of 128 when tiled.
    n_src_pad = _round_up(n_src, 16)
    if n_src_pad <= block_src:
        bs = n_src_pad
    else:
        bs = block_src
        n_src_pad = _round_up(n_src_pad, bs)

    # Row-normalized adjacency: f32 scatter (exact duplicate-edge adds), fused bf16 cast.
    A = (jnp.zeros((n_dst_pad, n_src_pad), jnp.float32)
         .at[dst, src].add(w_norm)).astype(jnp.bfloat16)

    x_flat2 = x_src.reshape(n_src, TC).astype(jnp.bfloat16)
    # lane-dense (128-wide) zero-padded features and the self-gather (no dense selector).
    x_flat = jnp.zeros((n_src_pad, TC_pad), jnp.bfloat16).at[:n_src, :TC].set(x_flat2)
    x_self = jnp.zeros((n_dst_pad, TC_pad), jnp.bfloat16).at[:n_dst, :TC].set(
        x_flat2[res_n_id])

    # block-diagonal kron(I_T, W_half), zero-padded to lane-dense [TC_pad, TO_pad].
    eye_t = jnp.eye(T, dtype=jnp.float32)
    Ws_big = jnp.zeros((TC_pad, TO_pad), jnp.float32).at[:TC, :TO].set(
        jnp.kron(eye_t, W[:C].astype(jnp.float32))).astype(jnp.bfloat16)
    Wa_big = jnp.zeros((TC_pad, TO_pad), jnp.float32).at[:TC, :TO].set(
        jnp.kron(eye_t, W[C:].astype(jnp.float32))).astype(jnp.bfloat16)
    b_row = jnp.zeros((1, TO_pad), jnp.float32).at[0, :TO].set(
        jnp.tile(b.astype(jnp.float32), T))

    grid = (n_dst_pad // bd, n_src_pad // bs)

    # explicit scoped-VMEM budget; capped at 48 MiB (< v7x 64 MiB physical) to leave
    # compiler-internal scratch headroom.
    out_bytes = np.dtype(out_dtype).itemsize
    vmem_bytes = (2 * bd * bs * 2                                   # A   (bf16, 2-buf)
                  + 2 * bs * TC_pad * 2                             # X   (bf16, 2-buf)
                  + 2 * bd * TC_pad * 2                             # x_self
                  + 2 * 2 * TC_pad * TO_pad * 2 + 2 * TO_pad * 4    # weights + bias
                  + 2 * bd * TO_pad * out_bytes                     # output (2-buf)
                  + bd * TC_pad * 4)                                # f32 accumulator
    vmem_limit = int(min(max(vmem_bytes * 3 // 2, 16 << 20), 48 << 20))

    out_pad = pl.pallas_call(
        fused_sage_kernel,
        out_shape=jax.ShapeDtypeStruct((n_dst_pad, TO_pad), out_dtype),
        grid_spec=pltpu.PrefetchScalarGridSpec(
            num_scalar_prefetch=0,
            grid=grid,
            in_specs=[
                pl.BlockSpec((bd, bs), lambda i, k: (i, k)),          # A
                pl.BlockSpec((bs, TC_pad), lambda i, k: (k, 0)),      # X (flattened feats)
                pl.BlockSpec((bd, TC_pad), lambda i, k: (i, 0)),      # x_self (row-gathered)
                pl.BlockSpec((TC_pad, TO_pad), lambda i, k: (0, 0)),  # kron(I_T, W_self)
                pl.BlockSpec((TC_pad, TO_pad), lambda i, k: (0, 0)),  # kron(I_T, W_aggr)
                pl.BlockSpec((1, TO_pad), lambda i, k: (0, 0)),       # bias (tiled over T)
            ],
            out_specs=pl.BlockSpec((bd, TO_pad), lambda i, k: (i, 0)),
            scratch_shapes=[pltpu.VMEM((bd, TC_pad), jnp.float32)],
        ),
        compiler_params=pltpu.CompilerParams(
            dimension_semantics=("parallel", "arbitrary"),
            vmem_limit_bytes=vmem_limit),
    )(A, x_flat, x_self, Ws_big, Wa_big, b_row)

    return out_pad[:n_dst, :TO].reshape(n_dst, T, O)


def sagenet_forward(X, g, params):
    """X: [T, N0, C_in]; returns [T, N2, out_channels] (float32)."""
    X = jnp.transpose(X, (1, 0, 2))  # -> [N0, T, C_in] (node-major, as in PyTorch)
    # layer-1 output stays bf16 on HBM (layer 2 consumes it in bf16 anyway).
    h1 = sage_conv_layer(X, g["edge_index"][0], g["edge_weight"][0],
                         g["size"][0], g["res_n_id"][0], params["W1"], params["b1"],
                         out_dtype=jnp.bfloat16)
    h2 = sage_conv_layer(h1, g["edge_index"][1], g["edge_weight"][1],
                         g["size"][1], g["res_n_id"][1], params["W2"], params["b2"],
                         out_dtype=jnp.float32)
    return jnp.transpose(h2, (1, 0, 2))  # -> [T, N2, out_channels]


# ---------------- pure-JAX f32 reference (correctness check) ----------------

def _ref_layer(x_src, edge_index, ew, size, res_n_id, W, b):
    n_src, n_dst = size
    src, dst = edge_index[0], edge_index[1]
    msgs = ew[:, None, None] * x_src[src]
    summ = jnp.zeros((n_dst,) + x_src.shape[1:], jnp.float32).at[dst].add(msgs)
    cnt = jnp.zeros((n_dst,), jnp.float32).at[dst].add(1.0)
    aggr = summ / jnp.maximum(cnt, 1.0)[:, None, None]
    cat = jnp.concatenate([x_src[res_n_id], aggr], axis=-1)
    y = cat @ W + b
    return jnp.where(y >= 0, y, 0.01 * y)


def _ref_forward(X, g, params):
    X = jnp.transpose(X, (1, 0, 2))
    h1 = _ref_layer(X, g["edge_index"][0], g["edge_weight"][0], g["size"][0],
                    g["res_n_id"][0], params["W1"], params["b1"])
    h2 = _ref_layer(h1, g["edge_index"][1], g["edge_weight"][1], g["size"][1],
                    g["res_n_id"][1], params["W2"], params["b2"])
    return jnp.transpose(h2, (1, 0, 2))


# ---------------- setup ----------------

if __name__ == "__main__":
    key = jax.random.PRNGKey(0)
    ks = jax.random.split(key, 12)

    T = 4            # time/window dim (first dim of X before permute)
    C_IN = 8         # in_channels
    HID = 16         # conv1 out (fixed by module)
    C_OUT = 8        # out_channels
    N0, N1, N2 = 16, 12, 8     # node counts per sampling hop
    E1, E2 = 48, 32            # edge counts per hop

    X = jax.random.normal(ks[0], (T, N0, C_IN), jnp.float32)

    # hop 1 graph: src in [0,N0), dst in [0,N1)
    ei1 = jnp.stack([jax.random.randint(ks[1], (E1,), 0, N0),
                     jax.random.randint(ks[2], (E1,), 0, N1)]).astype(jnp.int32)
    ew1 = jax.random.uniform(ks[3], (E1,), jnp.float32, 0.1, 1.0)
    res1 = jax.random.permutation(ks[4], N0)[:N1].astype(jnp.int32)

    # hop 2 graph: src in [0,N1), dst in [0,N2)
    ei2 = jnp.stack([jax.random.randint(ks[5], (E2,), 0, N1),
                     jax.random.randint(ks[6], (E2,), 0, N2)]).astype(jnp.int32)
    ew2 = jax.random.uniform(ks[7], (E2,), jnp.float32, 0.1, 1.0)
    res2 = jax.random.permutation(ks[8], N1)[:N2].astype(jnp.int32)

    g = {"edge_index": (ei1, ei2), "edge_weight": (ew1, ew2),
         "size": ((N0, N1), (N1, N2)), "res_n_id": (res1, res2)}

    # deterministic parameter init (PyG-style uniform(-1/sqrt(fan_in), 1/sqrt(fan_in)))
    def init_w(k, fan_in, shape):
        bound = 1.0 / np.sqrt(fan_in)
        return jax.random.uniform(k, shape, jnp.float32, -bound, bound)

    params = {
        "W1": init_w(ks[9], 2 * C_IN, (2 * C_IN, HID)),
        "b1": jnp.zeros((HID,), jnp.float32),
        "W2": init_w(ks[10], 2 * HID, (2 * HID, C_OUT)),
        "b2": jnp.zeros((C_OUT,), jnp.float32),
    }

    out = jax.block_until_ready(sagenet_forward(X, g, params))
    ref = jax.block_until_ready(_ref_forward(X, g, params))

    assert out.shape == (T, N2, C_OUT), out.shape
    # bf16 MXU inputs / bf16 inter-layer activations with f32 accumulation
    # -> ~1e-2 relative agreement vs f32 reference.
    np.testing.assert_allclose(np.asarray(out), np.asarray(ref), rtol=3e-2, atol=3e-2)
    print("KERNEL_OK")
</pallas_src>

<mosaic_0001>
module attributes {stable_mosaic.version = 11 : i64} {
  func.func @fused_sage_kernel(%arg0: i32, %arg1: i32, %arg2: memref<16x16xbf16, #tpu.memory_space<vmem>>, %arg3: memref<16x128xbf16, #tpu.memory_space<vmem>>, %arg4: memref<16x128xbf16, #tpu.memory_space<vmem>>, %arg5: memref<128x128xbf16, #tpu.memory_space<vmem>>, %arg6: memref<128x128xbf16, #tpu.memory_space<vmem>>, %arg7: memref<1x128xf32, #tpu.memory_space<vmem>>, %arg8: memref<16x128xbf16, #tpu.memory_space<vmem>>, %arg9: memref<16x128xf32, #tpu.memory_space<vmem>>) attributes {dimension_semantics = [#tpu.dimension_semantics<parallel>, #tpu.dimension_semantics<arbitrary>], iteration_bounds = array<i64: 1, 1>, scalar_prefetch = 0 : i64, scratch_operands = 1 : i64, tpu.core_type = #tpu.core_type<tc>, window_params = [{transform_indices = @transform_0, window_bounds = array<i64: 16, 16>}, {transform_indices = @transform_1, window_bounds = array<i64: 16, 128>}, {transform_indices = @transform_2, window_bounds = array<i64: 16, 128>}, {pipeline_mode = #tpu.pipeline_mode<synchronous>, transform_indices = @transform_3, window_bounds = array<i64: 128, 128>}, {pipeline_mode = #tpu.pipeline_mode<synchronous>, transform_indices = @transform_4, window_bounds = array<i64: 128, 128>}, {pipeline_mode = #tpu.pipeline_mode<synchronous>, transform_indices = @transform_5, window_bounds = array<i64: 1, 128>}, {transform_indices = @transform_6, window_bounds = array<i64: 16, 128>}]} {
    %c0_i32 = arith.constant 0 : i32
    %0 = arith.cmpi eq, %arg1, %c0_i32 : i32
    %1 = arith.extui %0 : i1 to i32
    %c0_i32_0 = arith.constant 0 : i32
    %2 = arith.cmpi ne, %1, %c0_i32_0 : i32
    scf.if %2 {
      %cst_10 = arith.constant 0.000000e+00 : f32
      %12 = vector.broadcast %cst_10 : f32 to vector<16x128xf32>
      %c0_11 = arith.constant 0 : index
      %c0_12 = arith.constant 0 : index
      %13 = vector.load %arg9[%c0_11, %c0_12] : memref<16x128xf32, #tpu.memory_space<vmem>>, vector<16x128xf32>
      tpu.vector_store %arg9[%c0_11, %c0_12], %12 {strides = array<i32>} : memref<16x128xf32, #tpu.memory_space<vmem>>, vector<16x128xf32>,
    } else {
    }
    %c0 = arith.constant 0 : index
    %c0_1 = arith.constant 0 : index
    %3 = vector.load %arg9[%c0, %c0_1] : memref<16x128xf32, #tpu.memory_space<vmem>>, vector<16x128xf32>
    %c0_2 = arith.constant 0 : index
    %c0_3 = arith.constant 0 : index
    %4 = vector.load %arg2[%c0_2, %c0_3] : memref<16x16xbf16, #tpu.memory_space<vmem>>, vector<16x16xbf16>
    %c0_4 = arith.constant 0 : index
    %c0_5 = arith.constant 0 : index
    %5 = vector.load %arg3[%c0_4, %c0_5] : memref<16x128xbf16, #tpu.memory_space<vmem>>, vector<16x128xbf16>
    %cst = arith.constant dense<0.000000e+00> : vector<16x128xf32>
    %6 = tpu.matmul %4, %5, %cst {dimension_numbers = #tpu.dot_dimension_numbers<[1], [0], [0], [1], [0, 0, 1, 1], [], []>} : vector<16x16xbf16>, vector<16x128xbf16>, vector<16x128xf32> -> vector<16x128xf32>
    %7 = arith.addf %3, %6 : vector<16x128xf32>
    %c0_6 = arith.constant 0 : index
    %c0_7 = arith.constant 0 : index
    %8 = vector.load %arg9[%c0_6, %c0_7] : memref<16x128xf32, #tpu.memory_space<vmem>>, vector<16x128xf32>
    tpu.vector_store %arg9[%c0_6, %c0_7], %7 {strides = array<i32>} : memref<16x128xf32, #tpu.memory_space<vmem>>, vector<16x128xf32>,
    %c0_i32_8 = arith.constant 0 : i32
    %9 = arith.cmpi eq, %arg1, %c0_i32_8 : i32
    %10 = arith.extui %9 : i1 to i32
    %c0_i32_9 = arith.constant 0 : i32
    %11 = arith.cmpi ne, %10, %c0_i32_9 : i32
    scf.if %11 {
      %c0_10 = arith.constant 0 : index
      %c0_11 = arith.constant 0 : index
      %12 = vector.load %arg4[%c0_10, %c0_11] : memref<16x128xbf16, #tpu.memory_space<vmem>>, vector<16x128xbf16>
      %c0_12 = arith.constant 0 : index
      %c0_13 = arith.constant 0 : index
      %13 = vector.load %arg5[%c0_12, %c0_13] : memref<128x128xbf16, #tpu.memory_space<vmem>>, vector<128x128xbf16>
      %cst_14 = arith.constant dense<0.000000e+00> : vector<16x128xf32>
      %14 = tpu.matmul %12, %13, %cst_14 {dimension_numbers = #tpu.dot_dimension_numbers<[1], [0], [0], [1], [0, 0, 1, 1], [], []>} : vector<16x128xbf16>, vector<128x128xbf16>, vector<16x128xf32> -> vector<16x128xf32>
      %c0_15 = arith.constant 0 : index
      %c0_16 = arith.constant 0 : index
      %15 = vector.load %arg9[%c0_15, %c0_16] : memref<16x128xf32, #tpu.memory_space<vmem>>, vector<16x128xf32>
      %16 = arith.truncf %15 : vector<16x128xf32> to vector<16x128xbf16>
      %c0_17 = arith.constant 0 : index
      %c0_18 = arith.constant 0 : index
      %17 = vector.load %arg6[%c0_17, %c0_18] : memref<128x128xbf16, #tpu.memory_space<vmem>>, vector<128x128xbf16>
      %cst_19 = arith.constant dense<0.000000e+00> : vector<16x128xf32>
      %18 = tpu.matmul %16, %17, %cst_19 {dimension_numbers = #tpu.dot_dimension_numbers<[1], [0], [0], [1], [0, 0, 1, 1], [], []>} : vector<16x128xbf16>, vector<128x128xbf16>, vector<16x128xf32> -> vector<16x128xf32>
      %19 = arith.addf %14, %18 : vector<16x128xf32>
      %c0_20 = arith.constant 0 : index
      %c0_21 = arith.constant 0 : index
      %20 = vector.load %arg7[%c0_20, %c0_21] : memref<1x128xf32, #tpu.memory_space<vmem>>, vector<1x128xf32>
      %21 = vector.broadcast %20 : vector<1x128xf32> to vector<16x128xf32>
      %22 = arith.addf %19, %21 : vector<16x128xf32>
      %cst_22 = arith.constant 0.000000e+00 : f32
      %23 = vector.broadcast %cst_22 : f32 to vector<16x128xf32>
      %24 = arith.cmpf oge, %22, %23 : vector<16x128xf32>
      %cst_23 = arith.constant 0.00999999977 : f32
      %25 = vector.broadcast %cst_23 : f32 to vector<16x128xf32>
      %26 = arith.mulf %25, %22 : vector<16x128xf32>
      %27 = arith.select %24, %22, %26 : vector<16x128xi1>, vector<16x128xf32>
      %28 = arith.truncf %27 : vector<16x128xf32> to vector<16x128xbf16>
      %c0_24 = arith.constant 0 : index
      %c0_25 = arith.constant 0 : index
      %29 = vector.load %arg8[%c0_24, %c0_25] : memref<16x128xbf16, #tpu.memory_space<vmem>>, vector<16x128xbf16>
      tpu.vector_store %arg8[%c0_24, %c0_25], %28 {strides = array<i32>} : memref<16x128xbf16, #tpu.memory_space<vmem>>, vector<16x128xbf16>,
    } else {
    }
    return
  }
  func.func @transform_0(%arg0: i32, %arg1: i32) -> (i32, i32) {
    %c0_i32 = arith.constant 0 : i32
    return %arg0, %arg1 : i32, i32
  }
  func.func @transform_1(%arg0: i32, %arg1: i32) -> (i32, i32) {
    %c0_i32 = arith.constant 0 : i32
    %c0_i32_0 = arith.constant 0 : i32
    return %arg1, %c0_i32 : i32, i32
  }
  func.func @transform_2(%arg0: i32, %arg1: i32) -> (i32, i32) {
    %c0_i32 = arith.constant 0 : i32
    %c0_i32_0 = arith.constant 0 : i32
    return %arg0, %c0_i32 : i32, i32
  }
  func.func @transform_3(%arg0: i32, %arg1: i32) -> (i32, i32) {
    %c0_i32 = arith.constant 0 : i32
    %c0_i32_0 = arith.constant 0 : i32
    %c0_i32_1 = arith.constant 0 : i32
    return %c0_i32, %c0_i32_0 : i32, i32
  }
  func.func @transform_4(%arg0: i32, %arg1: i32) -> (i32, i32) {
    %c0_i32 = arith.constant 0 : i32
    %c0_i32_0 = arith.constant 0 : i32
    %c0_i32_1 = arith.constant 0 : i32
    return %c0_i32, %c0_i32_0 : i32, i32
  }
  func.func @transform_5(%arg0: i32, %arg1: i32) -> (i32, i32) {
    %c0_i32 = arith.constant 0 : i32
    %c0_i32_0 = arith.constant 0 : i32
    %c0_i32_1 = arith.constant 0 : i32
    return %c0_i32, %c0_i32_0 : i32, i32
  }
  func.func @transform_6(%arg0: i32, %arg1: i32) -> (i32, i32) {
    %c0_i32 = arith.constant 0 : i32
    %c0_i32_0 = arith.constant 0 : i32
    return %arg0, %c0_i32 : i32, i32
  }
}

</mosaic_0001>

<llo_original>
// kernel: tpu_custom_call.1
$region0: #{tpu_custom_call.1}
  #allocation0 [shape = 'u32[]', space=smem, size = 0x4, offset = 0x4, fixed_abs, tag = 'smem constant byte address 0x4 - core index']
  #allocation1 [shape = 'u32[144,128]{1,0:T(1,128)}', space=vmem, size = 0x12000, scoped, tag = 'internal scratch']
  #allocation2 [shape = 'f32[16,128]{1,0:T(8,128)}', space=vmem, size = 0x2000, scoped, tag = 'scratch operand']
  %s0 = inlined_call_operand.hbm [shape: bf16[16,16], index: 0, kind: input, shape index: {}]
  %s1 = inlined_call_operand.hbm [shape: bf16[16,128], index: 1, kind: input, shape index: {}]
  %s2 = inlined_call_operand.hbm [shape: bf16[16,128], index: 2, kind: input, shape index: {}]
  %s3 = inlined_call_operand.hbm [shape: bf16[128,128], index: 3, kind: input, shape index: {}]
  %s4 = inlined_call_operand.hbm [shape: bf16[128,128], index: 4, kind: input, shape index: {}]
  %s5 = inlined_call_operand.vmem [shape: f32[1,128], index: 5, kind: input, shape index: {}]
  %s6 = inlined_call_operand.hbm [shape: bf16[16,128], index: 6, kind: output, shape index: {}]
  %s7 = sld [smem:[#allocation0]]
  $region62: #{tpu_custom_call.1} parent=0
    _
  %s9 = ssub.s32 1, %s7
  %s10 = scalar_select 0, %s9, %s7
  $region1: #{tpu_custom_call.1} parent=0
    #allocation3 [shape = 'u8[4096]{0}', space=vmem, size = 0x1000, scoped, tag = 'input window, operand 0, single buffered']
    #allocation4 [shape = 's32[1]{0}', space=sflag, size = 0x4, scoped, tag = 'scoped memory for tpu_custom_call.1']
    #allocation5 [shape = 's32[1]{0}', space=sflag, size = 0x4, scoped, tag = 'scoped memory for tpu_custom_call.1']
    #allocation6 [shape = 'u8[4096]{0}', space=vmem, size = 0x1000, scoped, tag = 'input window, operand 1, single buffered']
    #allocation7 [shape = 's32[1]{0}', space=sflag, size = 0x4, scoped, tag = 'scoped memory for tpu_custom_call.1']
    #allocation8 [shape = 'u8[4096]{0}', space=vmem, size = 0x1000, scoped, tag = 'input window, operand 2, single buffered']
    #allocation9 [shape = 'u8[32768]{0}', space=vmem, size = 0x8000, scoped, tag = 'input window, operand 3, single buffered']
    #allocation10 [shape = 's32[1]{0}', space=sflag, size = 0x4, scoped, tag = 'scoped memory for tpu_custom_call.1']
    #allocation11 [shape = 'u8[32768]{0}', space=vmem, size = 0x8000, scoped, tag = 'input window, operand 4, single buffered']
    #allocation12 [shape = 'u8[4096]{0}', space=vmem, size = 0x1000, scoped, tag = 'output window, operand 0, single buffered']
    %11 = vsyncpa [#allocation4], 0
    %12 = vsyncpa [#allocation7], 0
    %13 = vsyncpa [#allocation10], 0
    %14 = vsyncpa [#allocation5], 0
    // Predicated region
    $region2: #{tpu_custom_call.1} parent=1 // pred_check
      _
    $region3: #{tpu_custom_call.1} parent=1 // pred_check_branch
      %16 = sbr.rel (0) target = $region5
    $region4: #{tpu_custom_call.1} parent=1 // pred_region
      %s18 = ssub.s32 128, 128
      %19 = vsyncadd [#allocation4], %s18
      %s20 = sshll.u32 [#allocation3], 4
      %s21 = int_to_ptr.vmem [resolvable:$true] %s20
      %26 = dma.hbm_to_vmem [thread:$0]  %s0, 128, %s21, [#allocation4], 64, 64, 4
    $region5: #{tpu_custom_call.1} parent=1 // pred_fallthru
      _
    // Predicated region
    $region6: #{tpu_custom_call.1} parent=1 // pred_check
      _
    $region7: #{tpu_custom_call.1} parent=1 // pred_check_branch
      %28 = sbr.rel (0) target = $region9
    $region8: #{tpu_custom_call.1} parent=1 // pred_region
      %s30 = ssub.s32 128, 128
      %31 = vsyncadd [#allocation7], %s30
      %s32 = sshll.u32 [#allocation6], 4
      %s33 = int_to_ptr.vmem [resolvable:$true] %s32
      %38 = dma.hbm_to_vmem [thread:$0]  %s1, 128, %s33, [#allocation7], 64, 64, 4
    $region9: #{tpu_custom_call.1} parent=1 // pred_fallthru
      _
    // Predicated region
    $region10: #{tpu_custom_call.1} parent=1 // pred_check
      _
    $region11: #{tpu_custom_call.1} parent=1 // pred_check_branch
      %40 = sbr.rel (0) target = $region13
    $region12: #{tpu_custom_call.1} parent=1 // pred_region
      %s42 = ssub.s32 128, 128
      %43 = vsyncadd [#allocation7], %s42
      %s44 = sshll.u32 [#allocation8], 4
      %s45 = int_to_ptr.vmem [resolvable:$true] %s44
      %50 = dma.hbm_to_vmem [thread:$0]  %s2, 128, %s45, [#allocation7], 64, 64, 4
    $region13: #{tpu_custom_call.1} parent=1 // pred_fallthru
      _
    // Predicated region
    $region14: #{tpu_custom_call.1} parent=1 // pred_check
      _
    $region15: #{tpu_custom_call.1} parent=1 // pred_check_branch
      %52 = sbr.rel (0) target = $region17
    $region16: #{tpu_custom_call.1} parent=1 // pred_region
      %s54 = ssub.s32 1024, 1024
      %55 = vsyncadd [#allocation10], %s54
      %s56 = sshll.u32 [#allocation9], 4
      %s57 = int_to_ptr.vmem [resolvable:$true] %s56
      %62 = dma.hbm_to_vmem [thread:$0]  %s3, 1024, %s57, [#allocation10], 64, 64, 4
    $region17: #{tpu_custom_call.1} parent=1 // pred_fallthru
      _
    // Predicated region
    $region18: #{tpu_custom_call.1} parent=1 // pred_check
      _
    $region19: #{tpu_custom_call.1} parent=1 // pred_check_branch
      %64 = sbr.rel (0) target = $region21
    $region20: #{tpu_custom_call.1} parent=1 // pred_region
      %s66 = ssub.s32 1024, 1024
      %67 = vsyncadd [#allocation10], %s66
      %s68 = sshll.u32 [#allocation11], 4
      %s69 = int_to_ptr.vmem [resolvable:$true] %s68
      %74 = dma.hbm_to_vmem [thread:$0]  %s4, 1024, %s69, [#allocation10], 64, 64, 4
    $region21: #{tpu_custom_call.1} parent=1 // pred_fallthru
      _
    // Predicated region
    $region22: #{tpu_custom_call.1} parent=1 // pred_check
      _
    $region23: #{tpu_custom_call.1} parent=1 // pred_check_branch
      %76 = sbr.rel (0) target = $region25
    $region24: #{tpu_custom_call.1} parent=1 // pred_region
      _
    $region25: #{tpu_custom_call.1} parent=1 // pred_fallthru
      _
    // Predicated region
    $region26: #{tpu_custom_call.1} parent=1 // pred_check
      _
    $region27: #{tpu_custom_call.1} parent=1 // pred_check_branch
      %78 = sbr.rel (0) target = $region29
    $region28: #{tpu_custom_call.1} parent=1 // pred_region
      %79 = dma.done [#allocation4], 128
    $region29: #{tpu_custom_call.1} parent=1 // pred_fallthru
      _
    // Predicated region
    $region30: #{tpu_custom_call.1} parent=1 // pred_check
      _
    $region31: #{tpu_custom_call.1} parent=1 // pred_check_branch
      %81 = sbr.rel (0) target = $region33
    $region32: #{tpu_custom_call.1} parent=1 // pred_region
      %82 = dma.done [#allocation7], 128
    $region33: #{tpu_custom_call.1} parent=1 // pred_fallthru
      _
    // Predicated region
    $region34: #{tpu_custom_call.1} parent=1 // pred_check
      _
    $region35: #{tpu_custom_call.1} parent=1 // pred_check_branch
      %84 = sbr.rel (0) target = $region37
    $region36: #{tpu_custom_call.1} parent=1 // pred_region
      %85 = dma.done [#allocation7], 128
    $region37: #{tpu_custom_call.1} parent=1 // pred_fallthru
      _
    // Predicated region
    $region38: #{tpu_custom_call.1} parent=1 // pred_check
      _
    $region39: #{tpu_custom_call.1} parent=1 // pred_check_branch
      %87 = sbr.rel (0) target = $region41
    $region40: #{tpu_custom_call.1} parent=1 // pred_region
      %88 = dma.done [#allocation10], 1024
    $region41: #{tpu_custom_call.1} parent=1 // pred_fallthru
      _
    // Predicated region
    $region42: #{tpu_custom_call.1} parent=1 // pred_check
      _
    $region43: #{tpu_custom_call.1} parent=1 // pred_check_branch
      %90 = sbr.rel (0) target = $region45
    $region44: #{tpu_custom_call.1} parent=1 // pred_region
      %91 = dma.done [#allocation10], 1024
    $region45: #{tpu_custom_call.1} parent=1 // pred_fallthru
      _
    %p93 = scmp.eq.s32.totalorder 0, 0
    // Predicated region
    $region46: #{tpu_custom_call.1} parent=1 // pred_check
      %p94 = pneg %p93
    $region47: #{tpu_custom_call.1} parent=1 // pred_check_branch
      %96 = sbr.rel (%p94) target = $region49
    $region48: #{tpu_custom_call.1} parent=1 // pred_region
      %97 = vst [vmem:[#allocation2] sm:$0xff] 0.0
      %98 = vst [vmem:[#allocation2 + $0x8] sm:$0xff] 0.0
    $region49: #{tpu_custom_call.1} parent=1 // pred_fallthru
      _
    %v99 = vld [vmem:[#allocation2] sm:$0xff]
    %v100 = vld [vmem:[#allocation2 + $0x8] sm:$0xff]
    %v101 = vld [vmem:[#allocation3] sm:$0xf]
    %v102 = vld [vmem:[#allocation3 + $0x4] sm:$0xf]
    %v103 = vld [vmem:[#allocation6] sm:$0xf]
    %v104 = vld [vmem:[#allocation6 + $0x4] sm:$0xf]
    %v107 = vunpack.c.l.b16 %v101
    %v108 = vunpack.c.l.b16 %v102
    %v109 = vpack.c.b16 %v108, %v107
    %v112 = vunpack.c.l.b16 %v103
    %v113 = vunpack.c.l.b16 %v104
    %v114 = vpack.c.b16 %v113, %v112
    %vm116 = vcmask 130048
    %v118 = vsel %vm116, %v109, 0
    %120 = vmatprep.subr.bf16.mxu0 0
    %121 = vmatpush1.bf16.msra.mxu0 0
    %122 = vmatprep.subr.bf16.mxu0 0
    %123 = vmatpush1.bf16.msra.mxu0 0
    %124 = vmatprep.subr.bf16.mxu0 0
    %125 = vmatpush1.bf16.msra.mxu0 0
    %126 = vmatprep.subr.bf16.mxu0 0
    %127 = vmatpush1.bf16.msra.mxu0 0
    %128 = vmatprep.subr.bf16.mxu0 0
    %129 = vmatpush1.bf16.msra.mxu0 0
    %130 = vmatprep.subr.bf16.mxu0 0
    %131 = vmatpush1.bf16.msra.mxu0 0
    %132 = vmatprep.subr.bf16.mxu0 0
    %133 = vmatpush1.bf16.msra.mxu0 0
    %134 = vmatprep.subr.bf16.mxu0 0
    %135 = vmatpush1.bf16.msra.mxu0 %v114
    %136 = vmatprep.subr.bf16.mxu0 0
    %137 = vmatpush2.bf16.msra.mxu0 0
    %138 = vmatprep.subr.bf16.mxu0 0
    %139 = vmatpush2.bf16.msra.mxu0 0
    %140 = vmatprep.subr.bf16.mxu0 0
    %141 = vmatpush2.bf16.msra.mxu0 0
    %142 = vmatprep.subr.bf16.mxu0 0
    %143 = vmatpush2.bf16.msra.mxu0 0
    %144 = vmatprep.subr.bf16.mxu0 0
    %145 = vmatpush2.bf16.msra.mxu0 0
    %146 = vmatprep.subr.bf16.mxu0 0
    %147 = vmatpush2.bf16.msra.mxu0 0
    %148 = vmatprep.subr.bf16.mxu0 0
    %149 = vmatpush2.bf16.msra.mxu0 0
    %150 = vmatprep.subr.bf16.mxu0 0
    %151 = vmatpush2.bf16.msra.mxu0 0
    %152 = vmatprep.mubr.bf16.mxu0 0
    %153 = vmatmul.mubr.bf16.gmra.mxu0 %v118
    %v154 = vpop.f32.mrf.mxu0
    %v155 = vadd.f32 0.0, %v154
    %v156 = vpop.f32.mrf.mxu0
    %v157 = vpop.f32.mrf.mxu0
    %v158 = vadd.f32 0.0, %v157
    %v159 = vpop.f32.mrf.mxu0
    %160 = vdwg.mxu0
    %v161 = vadd.f32 %v99, %v155
    %v162 = vadd.f32 %v100, %v158
    %163 = vst [vmem:[#allocation2] sm:$0xff] %v161
    %164 = vst [vmem:[#allocation2 + $0x8] sm:$0xff] %v162
    // Predicated region
    $region50: #{tpu_custom_call.1} parent=1 // pred_check
      %p165 = pneg %p93
    $region51: #{tpu_custom_call.1} parent=1 // pred_check_branch
      %167 = sbr.rel (%p165) target = $region53
    $region52: #{tpu_custom_call.1} parent=1 // pred_region
      %v168 = vld [vmem:[#allocation8] sm:$0xf]
      %v169 = vld [vmem:[#allocation8 + $0x4] sm:$0xf]
      %v170 = vld [vmem:[#allocation9] sm:$0xf]
      %v171 = vld [vmem:[#allocation9 + $0x4] sm:$0xf]
      %v172 = vld [vmem:[#allocation9 + $0x8] sm:$0xf]
      %v173 = vld [vmem:[#allocation9 + $0xc] sm:$0xf]
      %v174 = vld [vmem:[#allocation9 + $0x10] sm:$0xf]
      %v175 = vld [vmem:[#allocation9 + $0x14] sm:$0xf]
      %v176 = vld [vmem:[#allocation9 + $0x18] sm:$0xf]
      %v177 = vld [vmem:[#allocation9 + $0x1c] sm:$0xf]
      %v178 = vld [vmem:[#allocation9 + $0x20] sm:$0xf]
      %v179 = vld [vmem:[#allocation9 + $0x24] sm:$0xf]
      %v180 = vld [vmem:[#allocation9 + $0x28] sm:$0xf]
      %v181 = vld [vmem:[#allocation9 + $0x2c] sm:$0xf]
      %v182 = vld [vmem:[#allocation9 + $0x30] sm:$0xf]
      %v183 = vld [vmem:[#allocation9 + $0x34] sm:$0xf]
      %v184 = vld [vmem:[#allocation9 + $0x38] sm:$0xf]
      %v185 = vld [vmem:[#allocation9 + $0x3c] sm:$0xf]
      %v186 = vld [vmem:[#allocation2] sm:$0xff]
      %v187 = vld [vmem:[#allocation2 + $0x8] sm:$0xff]
      %v188 = vpack.c.bf16 %v187, %v186
      %v189 = vld [vmem:[#allocation11] sm:$0xf]
      %v190 = vld [vmem:[#allocation11 + $0x4] sm:$0xf]
      %v191 = vld [vmem:[#allocation11 + $0x8] sm:$0xf]
      %v192 = vld [vmem:[#allocation11 + $0xc] sm:$0xf]
      %v193 = vld [vmem:[#allocation11 + $0x10] sm:$0xf]
      %v194 = vld [vmem:[#allocation11 + $0x14] sm:$0xf]
      %v195 = vld [vmem:[#allocation11 + $0x18] sm:$0xf]
      %v196 = vld [vmem:[#allocation11 + $0x1c] sm:$0xf]
      %v197 = vld [vmem:[#allocation11 + $0x20] sm:$0xf]
      %v198 = vld [vmem:[#allocation11 + $0x24] sm:$0xf]
      %v199 = vld [vmem:[#allocation11 + $0x28] sm:$0xf]
      %v200 = vld [vmem:[#allocation11 + $0x2c] sm:$0xf]
      %v201 = vld [vmem:[#allocation11 + $0x30] sm:$0xf]
      %v202 = vld [vmem:[#allocation11 + $0x34] sm:$0xf]
      %v203 = vld [vmem:[#allocation11 + $0x38] sm:$0xf]
      %v204 = vld [vmem:[#allocation11 + $0x3c] sm:$0xf]
      %v221 = vunpack.c.l.b16 %v189
      %v222 = vunpack.c.l.b16 %v190
      %v223 = vunpack.c.l.b16 %v191
      %v224 = vunpack.c.l.b16 %v192
      %v225 = vunpack.c.l.b16 %v193
      %v226 = vunpack.c.l.b16 %v194
      %v227 = vunpack.c.l.b16 %v195
      %v228 = vunpack.c.l.b16 %v196
      %v229 = vunpack.c.l.b16 %v197
      %v230 = vunpack.c.l.b16 %v198
      %v231 = vunpack.c.l.b16 %v199
      %v232 = vunpack.c.l.b16 %v200
      %v233 = vunpack.c.l.b16 %v201
      %v234 = vunpack.c.l.b16 %v202
      %v235 = vunpack.c.l.b16 %v203
      %v236 = vunpack.c.l.b16 %v204
      %v237 = vpack.c.b16 %v222, %v221
      %v238 = vpack.c.b16 %v224, %v223
      %v239 = vpack.c.b16 %v226, %v225
      %v240 = vpack.c.b16 %v228, %v227
      %v241 = vpack.c.b16 %v230, %v229
      %v242 = vpack.c.b16 %v232, %v231
      %v243 = vpack.c.b16 %v234, %v233
      %v244 = vpack.c.b16 %v236, %v235
      %253 = vmatprep.subr.bf16.mxu0 0
      %254 = vmatpush1.bf16.msra.mxu0 %v244
      %255 = vmatprep.subr.bf16.mxu0 0
      %256 = vmatpush1.bf16.msra.mxu0 %v243
      %257 = vmatprep.subr.bf16.mxu0 0
      %258 = vmatpush1.bf16.msra.mxu0 %v242
      %259 = vmatprep.subr.bf16.mxu0 0
      %260 = vmatpush1.bf16.msra.mxu0 %v241
      %261 = vmatprep.subr.bf16.mxu0 0
      %262 = vmatpush1.bf16.msra.mxu0 %v240
      %263 = vmatprep.subr.bf16.mxu0 0
      %264 = vmatpush1.bf16.msra.mxu0 %v239
      %265 = vmatprep.subr.bf16.mxu0 0
      %266 = vmatpush1.bf16.msra.mxu0 %v238
      %267 = vmatprep.subr.bf16.mxu0 0
      %268 = vmatpush1.bf16.msra.mxu0 %v237
      %269 = vmatprep.subr.bf16.mxu0 0
      %270 = vmatpush2.bf16.msra.mxu0 0
      %271 = vmatprep.subr.bf16.mxu0 0
      %272 = vmatpush2.bf16.msra.mxu0 0
      %273 = vmatprep.subr.bf16.mxu0 0
      %274 = vmatpush2.bf16.msra.mxu0 0
      %275 = vmatprep.subr.bf16.mxu0 0
      %276 = vmatpush2.bf16.msra.mxu0 0
      %277 = vmatprep.subr.bf16.mxu0 0
      %278 = vmatpush2.bf16.msra.mxu0 0
      %279 = vmatprep.subr.bf16.mxu0 0
      %280 = vmatpush2.bf16.msra.mxu0 0
      %281 = vmatprep.subr.bf16.mxu0 0
      %282 = vmatpush2.bf16.msra.mxu0 0
      %283 = vmatprep.subr.bf16.mxu0 0
      %284 = vmatpush2.bf16.msra.mxu0 0
      %285 = vmatprep.mubr.bf16.mxu0 0
      %286 = vmatmul.mubr.bf16.gmra.mxu0 %v188
      %v287 = vpop.f32.mrf.mxu0
      %v288 = vadd.f32 0.0, %v287
      %v289 = vpop.f32.mrf.mxu0
      %v290 = vpop.f32.mrf.mxu0
      %v291 = vadd.f32 0.0, %v290
      %v292 = vpop.f32.mrf.mxu0
      %293 = vdwg.mxu0
      %v296 = vunpack.c.l.b16 %v168
      %v297 = vunpack.c.l.b16 %v169
      %v298 = vpack.c.b16 %v297, %v296
      %v316 = vunpack.c.l.b16 %v170
      %v317 = vunpack.c.l.b16 %v171
      %v318 = vunpack.c.l.b16 %v172
      %v319 = vunpack.c.l.b16 %v173
      %v320 = vunpack.c.l.b16 %v174
      %v321 = vunpack.c.l.b16 %v175
      %v322 = vunpack.c.l.b16 %v176
      %v323 = vunpack.c.l.b16 %v177
      %v324 = vunpack.c.l.b16 %v178
      %v325 = vunpack.c.l.b16 %v179
      %v326 = vunpack.c.l.b16 %v180
      %v327 = vunpack.c.l.b16 %v181
      %v328 = vunpack.c.l.b16 %v182
      %v329 = vunpack.c.l.b16 %v183
      %v330 = vunpack.c.l.b16 %v184
      %v331 = vunpack.c.l.b16 %v185
      %v332 = vpack.c.b16 %v317, %v316
      %v333 = vpack.c.b16 %v319, %v318
      %v334 = vpack.c.b16 %v321, %v320
      %v335 = vpack.c.b16 %v323, %v322
      %v336 = vpack.c.b16 %v325, %v324
      %v337 = vpack.c.b16 %v327, %v326
      %v338 = vpack.c.b16 %v329, %v328
      %v339 = vpack.c.b16 %v331, %v330
      %348 = vmatprep.subr.bf16.mxu0 0
      %349 = vmatpush1.bf16.msra.mxu0 %v339
      %350 = vmatprep.subr.bf16.mxu0 0
      %351 = vmatpush1.bf16.msra.mxu0 %v338
      %352 = vmatprep.subr.bf16.mxu0 0
      %353 = vmatpush1.bf16.msra.mxu0 %v337
      %354 = vmatprep.subr.bf16.mxu0 0
      %355 = vmatpush1.bf16.msra.mxu0 %v336
      %356 = vmatprep.subr.bf16.mxu0 0
      %357 = vmatpush1.bf16.msra.mxu0 %v335
      %358 = vmatprep.subr.bf16.mxu0 0
      %359 = vmatpush1.bf16.msra.mxu0 %v334
      %360 = vmatprep.subr.bf16.mxu0 0
      %361 = vmatpush1.bf16.msra.mxu0 %v333
      %362 = vmatprep.subr.bf16.mxu0 0
      %363 = vmatpush1.bf16.msra.mxu0 %v332
      %364 = vmatprep.subr.bf16.mxu0 0
      %365 = vmatpush2.bf16.msra.mxu0 0
      %366 = vmatprep.subr.bf16.mxu0 0
      %367 = vmatpush2.bf16.msra.mxu0 0
      %368 = vmatprep.subr.bf16.mxu0 0
      %369 = vmatpush2.bf16.msra.mxu0 0
      %370 = vmatprep.subr.bf16.mxu0 0
      %371 = vmatpush2.bf16.msra.mxu0 0
      %372 = vmatprep.subr.bf16.mxu0 0
      %373 = vmatpush2.bf16.msra.mxu0 0
      %374 = vmatprep.subr.bf16.mxu0 0
      %375 = vmatpush2.bf16.msra.mxu0 0
      %376 = vmatprep.subr.bf16.mxu0 0
      %377 = vmatpush2.bf16.msra.mxu0 0
      %378 = vmatprep.subr.bf16.mxu0 0
      %379 = vmatpush2.bf16.msra.mxu0 0
      %380 = vmatprep.mubr.bf16.mxu0 0
      %381 = vmatmul.mubr.bf16.gmra.mxu0 %v298
      %v382 = vpop.f32.mrf.mxu0
      %v383 = vadd.f32 %v288, %v382
      %v384 = vpop.f32.mrf.mxu0
      %v385 = vpop.f32.mrf.mxu0
      %v386 = vadd.f32 %v291, %v385
      %v387 = vpop.f32.mrf.mxu0
      %388 = vdwg.mxu0
      %v389 = vld [vmem:[%s5] sm:$0x1]
      %v391 = vlaneseq
      %v392 = vshrl.u32 %v391, 7
      %v393 = vsub.s32 0, %v392
      %v394 = vrot.slane %v389, %v393
      %v396 = vadd.f32 %v383, %v394
      %v397 = vadd.f32 %v386, %v394
      %vm398 = vcmp.ge.f32.partialorder %v396, 0.0
      %vm399 = vcmp.ge.f32.partialorder %v397, 0.0
      %v400 = vmul.f32 %v396, 0.01
      %v401 = vmul.f32 %v397, 0.01
      %v402 = vsel %vm398, %v396, %v400
      %v403 = vsel %vm399, %v397, %v401
      %v404 = vpack.c.bf16 %v403, %v402
      %v406 = vunpack.c.l.b16 %v404
      %v407 = vunpack.c.h.b16 %v404
      %v408 = vpack.c.b16 %v406, %v406
      %v409 = vpack.c.b16 %v407, %v407
      %412 = vst [vmem:[#allocation12] sm:$0xf] %v408
      %413 = vst [vmem:[#allocation12 + $0x4] sm:$0xf] %v409
    $region53: #{tpu_custom_call.1} parent=1 // pred_fallthru
      _
    // Predicated region
    $region54: #{tpu_custom_call.1} parent=1 // pred_check
      _
    $region55: #{tpu_custom_call.1} parent=1 // pred_check_branch
      %415 = sbr.rel (0) target = $region57
    $region56: #{tpu_custom_call.1} parent=1 // pred_region
      %s417 = ssub.s32 128, 128
      %418 = vsyncadd [#allocation5], %s417
      %s419 = sshll.u32 [#allocation12], 4
      %s420 = int_to_ptr.vmem [resolvable:$true] %s419
      %425 = dma.vmem_to_hbm [thread:$0]  %s420, 128, %s6, [#allocation5], 64, 64, 4
    $region57: #{tpu_custom_call.1} parent=1 // pred_fallthru
      _
    // Predicated region
    $region58: #{tpu_custom_call.1} parent=1 // pred_check
      _
    $region59: #{tpu_custom_call.1} parent=1 // pred_check_branch
      %427 = sbr.rel (0) target = $region61
    $region60: #{tpu_custom_call.1} parent=1 // pred_region
      %428 = dma.done [#allocation5], 128
    $region61: #{tpu_custom_call.1} parent=1 // pred_fallthru
      _
    %429 = vsyncpa [#allocation4], 1
    %430 = vsyncpa [#allocation7], 1
    %431 = vsyncpa [#allocation10], 1
    %432 = vsyncpa [#allocation5], 1

</llo_original>
